<compile_context>
chip_gen: v6e
topology: v6e:2x2x1
jax: 0.10.0
libtpu: 0.0.40
codegen_flags: <defaults>
</compile_context>

<pallas_src>
import jax
import jax.numpy as jnp
from jax.experimental import pallas as pl
from jax.experimental.pallas import tpu as pltpu


def _vmem_capacity_bytes():
    try:
        return int(pltpu.get_tpu_info().vmem_capacity_bytes)
    except Exception:
        return 64 * 1024 * 1024  # conservative fallback: v7x per-TensorCore VMEM


def _round_up(x, m):
    return ((x + m - 1) // m) * m


# ----------------------------------------------------------------------------
# Fused kernel: grid=(N,), whole (C, HW) slab resident, single HBM read of x.
# ----------------------------------------------------------------------------
def _scse_fused_kernel(x_ref, w1_ref, b1_ref, w2t_ref, b2c_ref, ws_ref, bs_ref,
                       out_ref):
    # x_ref block: (1, C, HW) ; out_ref block: (1, 2C, HW)
    c = x_ref.shape[1]
    hw = x_ref.shape[2]
    x = x_ref[0]                                   # (C, HW), input dtype
    xf = x.astype(jnp.float32)

    # ---- channel SE: avg pool (lane reduce) + tiny MLP, C kept in sublanes ----
    avg = jnp.sum(xf, axis=1, keepdims=True) * (1.0 / float(hw))          # (C, 1)
    h = jnp.maximum(
        jnp.sum(avg * w1_ref[...], axis=0, keepdims=True) + b1_ref[...],  # (1, Cmid)
        0.0)
    cscale = jax.nn.sigmoid(
        jnp.sum(h * w2t_ref[...], axis=1, keepdims=True) + b2c_ref[...])  # (C, 1)
    out_ref[0, 0:c, :] = (xf * cscale).astype(out_ref.dtype)

    # ---- spatial SE: per-pixel scale via VPU mul + sublane reduce (per-lane) ----
    s = jnp.sum(xf * ws_ref[...], axis=0, keepdims=True) + bs_ref[0]      # (1, HW)
    out_ref[0, c:, :] = (xf * jax.nn.sigmoid(s)).astype(out_ref.dtype)


# ----------------------------------------------------------------------------
# Tiled fallback kernel: grid=(N, cdiv(HW, tile)); cSE scale precomputed.
# ----------------------------------------------------------------------------
def _scse_tiled_kernel(x_ref, cscale_ref, ws_ref, bs_ref, out_ref):
    # x_ref block: (1, C, T) ; out_ref block: (1, 2C, T)
    c = x_ref.shape[1]
    x = x_ref[0]
    xf = x.astype(jnp.float32)

    # channel SE (scale per batch, precomputed in the wrapper)
    out_ref[0, 0:c, :] = (xf * cscale_ref[0]).astype(out_ref.dtype)

    # spatial SE (per-lane; ragged-edge padding lanes never mix into valid lanes)
    s = jnp.sum(xf * ws_ref[...], axis=0, keepdims=True) + bs_ref[0]
    out_ref[0, c:, :] = (xf * jax.nn.sigmoid(s)).astype(out_ref.dtype)


def attention_scse(x_nchw, w1, b1, w2, b2, ws, bs, *, path="auto", _tile=None):
    """x_nchw: (N, C, H, W) float32 or bfloat16. Returns (N, 2*C, H, W) in x's dtype."""
    N, C, H, W = x_nchw.shape
    HW = H * W
    dtype = x_nchw.dtype
    isize = jnp.dtype(dtype).itemsize
    x = x_nchw.reshape(N, C, HW)                                 # free (contiguous)

    cap = _vmem_capacity_bytes()
    vmem_limit = int(min(cap * 3 // 4, 96 * 1024 * 1024))

    bs_smem = bs.reshape(1).astype(jnp.float32)                  # scalar bias -> SMEM
    ws_f = ws.astype(jnp.float32)                                # (C, 1)

    # Fused-path footprint: double-buffered x (2*C*HW) + out (2*2C*HW) + ~4 f32 temps.
    fused_bytes = C * HW * (6 * isize + 16)
    fused_budget = min(cap // 2, 48 * 1024 * 1024)

    # Tiled-path tile: biggest multiple of 128 lanes under the budget (cdiv grid keeps it
    # large regardless of HW's factorization — never collapses to 128 lanes).
    tiled_budget = min(cap // 3, 24 * 1024 * 1024)
    bytes_per_lane = C * (6 * isize + 12)
    cap_lanes = max(128, tiled_budget // bytes_per_lane)
    tile = max(128, (cap_lanes // 128) * 128)
    tile = min(tile, _round_up(HW, 128))
    if _tile is not None:
        tile = int(_tile)
    n_tiles = int(pl.cdiv(HW, tile))

    if path == "auto":
        # Fuse whenever the slab fits; for N==1 prefer the tiled path if it yields >1 grid
        # step so both v7x TensorCores get work (the separate pool read is then amortized).
        use_fused = (fused_bytes <= fused_budget) and (N >= 2 or n_tiles <= 1)
    else:
        use_fused = (path == "fused")

    if use_fused:
        Cmid = w1.shape[1]
        w1_f = w1.astype(jnp.float32)                            # (C, Cmid)
        b1_f = b1.reshape(1, Cmid).astype(jnp.float32)           # (1, Cmid)
        w2t_f = w2.T.astype(jnp.float32)                         # (C, Cmid)
        b2c_f = b2.reshape(C, 1).astype(jnp.float32)             # (C, 1)

        out = pl.pallas_call(
            _scse_fused_kernel,
            out_shape=jax.ShapeDtypeStruct((N, 2 * C, HW), dtype),
            grid_spec=pltpu.PrefetchScalarGridSpec(
                num_scalar_prefetch=0,
                grid=(N,),
                in_specs=[
                    pl.BlockSpec((1, C, HW), lambda n: (n, 0, 0)),      # x slab
                    pl.BlockSpec((C, Cmid), lambda n: (0, 0)),          # w1
                    pl.BlockSpec((1, Cmid), lambda n: (0, 0)),          # b1
                    pl.BlockSpec((C, Cmid), lambda n: (0, 0)),          # w2^T
                    pl.BlockSpec((C, 1), lambda n: (0, 0)),             # b2 (col)
                    pl.BlockSpec((C, 1), lambda n: (0, 0)),             # ws
                    pl.BlockSpec(memory_space=pltpu.MemorySpace.SMEM),  # bs (scalar)
                ],
                out_specs=pl.BlockSpec((1, 2 * C, HW), lambda n: (n, 0, 0)),
            ),
            compiler_params=pltpu.CompilerParams(
                dimension_semantics=("parallel",),
                vmem_limit_bytes=vmem_limit,
            ),
            cost_estimate=pl.CostEstimate(
                flops=6 * N * C * HW,
                transcendentals=N * (HW + C),
                bytes_accessed=3 * N * C * HW * isize,
            ),
        )(x, w1_f, b1_f, w2t_f, b2c_f, ws_f, bs_smem)
    else:
        # Channel-SE scale precomputed in f32 in the wrapper (one extra HBM read of x,
        # only taken when the slab is too big to keep resident or N==1 on v7x).
        avg = jnp.mean(x, axis=2, dtype=jnp.float32)                            # (N, C)
        h = jnp.maximum(
            jnp.dot(avg, w1.astype(jnp.float32),
                    precision=jax.lax.Precision.HIGHEST) + b1.astype(jnp.float32)[0],
            0.0)
        cscale = jax.nn.sigmoid(
            jnp.dot(h, w2.astype(jnp.float32),
                    precision=jax.lax.Precision.HIGHEST)
            + b2.astype(jnp.float32)[0])[:, :, None]                            # (N, C, 1)

        out = pl.pallas_call(
            _scse_tiled_kernel,
            out_shape=jax.ShapeDtypeStruct((N, 2 * C, HW), dtype),
            grid_spec=pltpu.PrefetchScalarGridSpec(
                num_scalar_prefetch=0,
                grid=(N, n_tiles),
                in_specs=[
                    pl.BlockSpec((1, C, tile), lambda n, t: (n, 0, t)),     # x
                    pl.BlockSpec((1, C, 1), lambda n, t: (n, 0, 0)),        # cscale
                    pl.BlockSpec((C, 1), lambda n, t: (0, 0)),              # ws
                    pl.BlockSpec(memory_space=pltpu.MemorySpace.SMEM),      # bs
                ],
                out_specs=pl.BlockSpec((1, 2 * C, tile), lambda n, t: (n, 0, t)),
            ),
            compiler_params=pltpu.CompilerParams(
                dimension_semantics=("parallel", "parallel"),
                vmem_limit_bytes=vmem_limit,
            ),
            cost_estimate=pl.CostEstimate(
                flops=4 * N * C * HW,
                transcendentals=N * HW,
                bytes_accessed=3 * N * C * HW * isize,
            ),
        )(x, cscale, ws_f, bs_smem)

    return out.reshape(N, 2 * C, H, W)                           # free


def reference_scse(x, w1, b1, w2, b2, ws, bs):
    """Pure-JAX reference matching PyTorch NCHW semantics (full-f32 precision)."""
    hi = jax.lax.Precision.HIGHEST
    avg = x.mean(axis=(2, 3))                                                # (N, C)
    h = jnp.maximum(jnp.dot(avg, w1, precision=hi) + b1[0], 0.0)             # (N, Cmid)
    cscale = jax.nn.sigmoid(jnp.dot(h, w2, precision=hi) + b2[0])            # (N, C)
    cse = x * cscale[:, :, None, None]
    sscale = jax.nn.sigmoid(
        jnp.einsum('nchw,c->nhw', x, ws[:, 0], precision=hi) + bs[0, 0])     # (N, H, W)
    sse = x * sscale[:, None, :, :]
    return jnp.concatenate([cse, sse], axis=1)


if __name__ == "__main__":
    # in_channels must be >= reduction(=16) for the PyTorch module to be valid.
    N, C, H, W = 2, 32, 16, 16
    reduction = 16
    Cmid = C // reduction

    key = jax.random.PRNGKey(0)
    kx, k1, kb1, k2, kb2, ks, kbs = jax.random.split(key, 7)

    x = jax.random.normal(kx, (N, C, H, W), dtype=jnp.float32)

    # Conv 1x1 weights stored as (C_in, C_out) matrices.
    w1 = jax.random.normal(k1, (C, Cmid), dtype=jnp.float32) * 0.1
    b1 = jax.random.normal(kb1, (1, Cmid), dtype=jnp.float32) * 0.1
    w2 = jax.random.normal(k2, (Cmid, C), dtype=jnp.float32) * 0.1
    b2 = jax.random.normal(kb2, (1, C), dtype=jnp.float32) * 0.1
    ws = jax.random.normal(ks, (C, 1), dtype=jnp.float32) * 0.1
    bs = jax.random.normal(kbs, (1, 1), dtype=jnp.float32) * 0.1

    # --- fused path (auto-selected: N>=2 and slab fits VMEM) ---
    ref = reference_scse(x, w1, b1, w2, b2, ws, bs)
    out = jax.block_until_ready(attention_scse(x, w1, b1, w2, b2, ws, bs))
    assert out.shape == (N, 2 * C, H, W), out.shape
    assert jnp.allclose(out, ref, atol=1e-4, rtol=1e-4), \
        float(jnp.max(jnp.abs(out - ref)))

    # --- tiled fallback path with a ragged cdiv edge (HW=400, tile=256 -> 2 blocks) ---
    H2 = W2 = 20
    x2 = jax.random.normal(kx, (N, C, H2, W2), dtype=jnp.float32)
    ref2 = reference_scse(x2, w1, b1, w2, b2, ws, bs)
    out2 = jax.block_until_ready(
        attention_scse(x2, w1, b1, w2, b2, ws, bs, path="tiled", _tile=256))
    assert out2.shape == (N, 2 * C, H2, W2), out2.shape
    assert jnp.allclose(out2, ref2, atol=1e-4, rtol=1e-4), \
        float(jnp.max(jnp.abs(out2 - ref2)))

    # --- bf16 I/O path (halves HBM traffic); compare against f32 ref on bf16-rounded x ---
    xb = x.astype(jnp.bfloat16)
    refb = reference_scse(xb.astype(jnp.float32), w1, b1, w2, b2, ws, bs)
    outb = jax.block_until_ready(attention_scse(xb, w1, b1, w2, b2, ws, bs))
    assert outb.dtype == jnp.bfloat16 and outb.shape == (N, 2 * C, H, W)
    assert jnp.allclose(outb.astype(jnp.float32), refb, atol=5e-2, rtol=5e-2), \
        float(jnp.max(jnp.abs(outb.astype(jnp.float32) - refb)))

    print("KERNEL_OK")
</pallas_src>

<mosaic_0001>
module attributes {stable_mosaic.version = 11 : i64} {
  func.func @_scse_fused_kernel(%arg0: i32, %arg1: memref<1x32x256xf32, #tpu.memory_space<vmem>>, %arg2: memref<32x2xf32, #tpu.memory_space<vmem>>, %arg3: memref<1x2xf32, #tpu.memory_space<vmem>>, %arg4: memref<32x2xf32, #tpu.memory_space<vmem>>, %arg5: memref<32x1xf32, #tpu.memory_space<vmem>>, %arg6: memref<32x1xf32, #tpu.memory_space<vmem>>, %arg7: memref<1xf32, #tpu.memory_space<smem>>, %arg8: memref<1x64x256xf32, #tpu.memory_space<vmem>>) attributes {dimension_semantics = [#tpu.dimension_semantics<parallel>], iteration_bounds = array<i64: 2>, scalar_prefetch = 0 : i64, scratch_operands = 0 : i64, tpu.core_type = #tpu.core_type<tc>, window_params = [{transform_indices = @transform_0, window_bounds = array<i64: 1, 32, 256>}, {pipeline_mode = #tpu.pipeline_mode<synchronous>, transform_indices = @transform_1, window_bounds = array<i64: 32, 2>}, {pipeline_mode = #tpu.pipeline_mode<synchronous>, transform_indices = @transform_2, window_bounds = array<i64: 1, 2>}, {pipeline_mode = #tpu.pipeline_mode<synchronous>, transform_indices = @transform_3, window_bounds = array<i64: 32, 2>}, {pipeline_mode = #tpu.pipeline_mode<synchronous>, transform_indices = @transform_4, window_bounds = array<i64: 32, 1>}, {pipeline_mode = #tpu.pipeline_mode<synchronous>, transform_indices = @transform_5, window_bounds = array<i64: 32, 1>}, {transform_indices = @transform_6, window_bounds = array<i64: 1>}, {transform_indices = @transform_7, window_bounds = array<i64: 1, 64, 256>}]} {
    %c0 = arith.constant 0 : index
    %c0_0 = arith.constant 0 : index
    %c0_1 = arith.constant 0 : index
    %0 = vector.load %arg1[%c0, %c0_0, %c0_1] : memref<1x32x256xf32, #tpu.memory_space<vmem>>, vector<1x32x256xf32>
    %1 = vector.shape_cast %0 : vector<1x32x256xf32> to vector<32x256xf32>
    %cst = arith.constant dense<0.000000e+00> : vector<32xf32>
    %2 = vector.multi_reduction <add>, %1, %cst [1] : vector<32x256xf32> to vector<32xf32>
    %3 = vector.shape_cast %2 : vector<32xf32> to vector<32x1xf32>
    %cst_2 = arith.constant 3.906250e-03 : f32
    %4 = vector.broadcast %cst_2 : f32 to vector<32x1xf32>
    %5 = arith.mulf %3, %4 : vector<32x1xf32>
    %c0_3 = arith.constant 0 : index
    %c0_4 = arith.constant 0 : index
    %6 = vector.load %arg2[%c0_3, %c0_4] : memref<32x2xf32, #tpu.memory_space<vmem>>, vector<32x2xf32>
    %7 = vector.broadcast %5 : vector<32x1xf32> to vector<32x2xf32>
    %8 = arith.mulf %7, %6 : vector<32x2xf32>
    %cst_5 = arith.constant dense<0.000000e+00> : vector<2xf32>
    %9 = vector.multi_reduction <add>, %8, %cst_5 [0] : vector<32x2xf32> to vector<2xf32>
    %10 = vector.shape_cast %9 : vector<2xf32> to vector<1x2xf32>
    %c0_6 = arith.constant 0 : index
    %c0_7 = arith.constant 0 : index
    %11 = vector.load %arg3[%c0_6, %c0_7] : memref<1x2xf32, #tpu.memory_space<vmem>>, vector<1x2xf32>
    %12 = arith.addf %10, %11 : vector<1x2xf32>
    %cst_8 = arith.constant 0.000000e+00 : f32
    %13 = vector.broadcast %cst_8 : f32 to vector<1x2xf32>
    %14 = arith.maximumf %12, %13 : vector<1x2xf32>
    %c0_9 = arith.constant 0 : index
    %c0_10 = arith.constant 0 : index
    %15 = vector.load %arg4[%c0_9, %c0_10] : memref<32x2xf32, #tpu.memory_space<vmem>>, vector<32x2xf32>
    %16 = vector.broadcast %14 : vector<1x2xf32> to vector<32x2xf32>
    %17 = arith.mulf %16, %15 : vector<32x2xf32>
    %cst_11 = arith.constant dense<0.000000e+00> : vector<32xf32>
    %18 = vector.multi_reduction <add>, %17, %cst_11 [1] : vector<32x2xf32> to vector<32xf32>
    %19 = vector.shape_cast %18 : vector<32xf32> to vector<32x1xf32>
    %c0_12 = arith.constant 0 : index
    %c0_13 = arith.constant 0 : index
    %20 = vector.load %arg5[%c0_12, %c0_13] : memref<32x1xf32, #tpu.memory_space<vmem>>, vector<32x1xf32>
    %21 = arith.addf %19, %20 : vector<32x1xf32>
    %22 = arith.negf %21 : vector<32x1xf32>
    %23 = math.exp %22 : vector<32x1xf32>
    %cst_14 = arith.constant 1.000000e+00 : f32
    %24 = vector.broadcast %cst_14 : f32 to vector<32x1xf32>
    %25 = arith.addf %24, %23 : vector<32x1xf32>
    %26 = arith.divf %24, %25 : vector<32x1xf32>
    %27 = vector.broadcast %26 : vector<32x1xf32> to vector<32x256xf32>
    %28 = arith.mulf %1, %27 : vector<32x256xf32>
    %c0_15 = arith.constant 0 : index
    %c0_16 = arith.constant 0 : index
    %c0_17 = arith.constant 0 : index
    %29 = vector.load %arg8[%c0_15, %c0_16, %c0_17] : memref<1x64x256xf32, #tpu.memory_space<vmem>>, vector<1x32x256xf32>
    %30 = vector.shape_cast %29 : vector<1x32x256xf32> to vector<32x256xf32>
    %31 = vector.shape_cast %28 : vector<32x256xf32> to vector<1x32x256xf32>
    tpu.vector_store %arg8[%c0_15, %c0_16, %c0_17], %31 {strides = array<i32>} : memref<1x64x256xf32, #tpu.memory_space<vmem>>, vector<1x32x256xf32>,
    %c0_18 = arith.constant 0 : index
    %c0_19 = arith.constant 0 : index
    %32 = vector.load %arg6[%c0_18, %c0_19] : memref<32x1xf32, #tpu.memory_space<vmem>>, vector<32x1xf32>
    %33 = vector.broadcast %32 : vector<32x1xf32> to vector<32x256xf32>
    %34 = arith.mulf %1, %33 : vector<32x256xf32>
    %cst_20 = arith.constant dense<0.000000e+00> : vector<256xf32>
    %35 = vector.multi_reduction <add>, %34, %cst_20 [0] : vector<32x256xf32> to vector<256xf32>
    %36 = vector.shape_cast %35 : vector<256xf32> to vector<1x256xf32>
    %c0_21 = arith.constant 0 : index
    %37 = memref.load %arg7[%c0_21] : memref<1xf32, #tpu.memory_space<smem>>
    %38 = vector.broadcast %37 : f32 to vector<1x256xf32>
    %39 = arith.addf %36, %38 : vector<1x256xf32>
    %40 = arith.negf %39 : vector<1x256xf32>
    %41 = math.exp %40 : vector<1x256xf32>
    %cst_22 = arith.constant 1.000000e+00 : f32
    %42 = vector.broadcast %cst_22 : f32 to vector<1x256xf32>
    %43 = arith.addf %42, %41 : vector<1x256xf32>
    %44 = arith.divf %42, %43 : vector<1x256xf32>
    %45 = vector.broadcast %44 : vector<1x256xf32> to vector<32x256xf32>
    %46 = arith.mulf %1, %45 : vector<32x256xf32>
    %c0_23 = arith.constant 0 : index
    %c32 = arith.constant 32 : index
    %c0_24 = arith.constant 0 : index
    %47 = vector.load %arg8[%c0_23, %c32, %c0_24] : memref<1x64x256xf32, #tpu.memory_space<vmem>>, vector<1x32x256xf32>
    %48 = vector.shape_cast %47 : vector<1x32x256xf32> to vector<32x256xf32>
    %49 = vector.shape_cast %46 : vector<32x256xf32> to vector<1x32x256xf32>
    tpu.vector_store %arg8[%c0_23, %c32, %c0_24], %49 {strides = array<i32>} : memref<1x64x256xf32, #tpu.memory_space<vmem>>, vector<1x32x256xf32>,
    return
  }
  func.func @transform_0(%arg0: i32) -> (i32, i32, i32) {
    %c0_i32 = arith.constant 0 : i32
    %c0_i32_0 = arith.constant 0 : i32
    %c0_i32_1 = arith.constant 0 : i32
    return %arg0, %c0_i32, %c0_i32_0 : i32, i32, i32
  }
  func.func @transform_1(%arg0: i32) -> (i32, i32) {
    %c0_i32 = arith.constant 0 : i32
    %c0_i32_0 = arith.constant 0 : i32
    %c0_i32_1 = arith.constant 0 : i32
    return %c0_i32, %c0_i32_0 : i32, i32
  }
  func.func @transform_2(%arg0: i32) -> (i32, i32) {
    %c0_i32 = arith.constant 0 : i32
    %c0_i32_0 = arith.constant 0 : i32
    %c0_i32_1 = arith.constant 0 : i32
    return %c0_i32, %c0_i32_0 : i32, i32
  }
  func.func @transform_3(%arg0: i32) -> (i32, i32) {
    %c0_i32 = arith.constant 0 : i32
    %c0_i32_0 = arith.constant 0 : i32
    %c0_i32_1 = arith.constant 0 : i32
    return %c0_i32, %c0_i32_0 : i32, i32
  }
  func.func @transform_4(%arg0: i32) -> (i32, i32) {
    %c0_i32 = arith.constant 0 : i32
    %c0_i32_0 = arith.constant 0 : i32
    %c0_i32_1 = arith.constant 0 : i32
    return %c0_i32, %c0_i32_0 : i32, i32
  }
  func.func @transform_5(%arg0: i32) -> (i32, i32) {
    %c0_i32 = arith.constant 0 : i32
    %c0_i32_0 = arith.constant 0 : i32
    %c0_i32_1 = arith.constant 0 : i32
    return %c0_i32, %c0_i32_0 : i32, i32
  }
  func.func @transform_6(%arg0: i32) -> i32 {
    %c0_i32 = arith.constant 0 : i32
    %c0_i32_0 = arith.constant 0 : i32
    return %c0_i32 : i32
  }
  func.func @transform_7(%arg0: i32) -> (i32, i32, i32) {
    %c0_i32 = arith.constant 0 : i32
    %c0_i32_0 = arith.constant 0 : i32
    %c0_i32_1 = arith.constant 0 : i32
    return %arg0, %c0_i32, %c0_i32_0 : i32, i32, i32
  }
}

</mosaic_0001>

<llo_original>
// kernel: tpu_custom_call.1
$region0: #{tpu_custom_call.1}
  #allocation0 [shape = 'u32[]', space=smem, size = 0x4, offset = 0x4, fixed_abs, tag = 'smem constant byte address 0x4 - core index']
  #allocation1 [shape = 'u32[144,128]{1,0:T(1,128)}', space=vmem, size = 0x12000, scoped, tag = 'internal scratch']
  #allocation2 [shape = 'f32[1]{0:T(128)S(6)}', space=smem, size = 0x200, scoped, tag = 'scoped memory for tpu_custom_call.1']
  %s0 = inlined_call_operand.vmem [shape: f32[2,32,256], index: 0, kind: input, shape index: {}]
  %s1 = inlined_call_operand.vmem [shape: f32[32,2], index: 1, kind: input, shape index: {}]
  %s2 = inlined_call_operand.vmem [shape: f32[1,2], index: 2, kind: input, shape index: {}]
  %s3 = inlined_call_operand.vmem [shape: f32[32,2], index: 3, kind: input, shape index: {}]
  %s4 = inlined_call_operand.vmem [shape: f32[32,1], index: 4, kind: input, shape index: {}]
  %s5 = inlined_call_operand.vmem [shape: f32[32,1], index: 5, kind: input, shape index: {}]
  %s6 = inlined_call_operand.<no memory space> [shape: f32[1], index: 6, kind: input, shape index: {}]
  %s7 = inlined_call_operand.hbm [shape: f32[2,64,256], index: 7, kind: output, shape index: {}]
  %s8 = sld [smem:[#allocation0]]
  $region61: #{tpu_custom_call.1} parent=0
    _
  %s10 = ssub.s32 1, %s8
  %s11 = scalar_select 0, %s10, %s8
  %12 = sst [smem:[#allocation2]] %s6
  $region1: #{tpu_custom_call.1} parent=0
    #allocation3 [shape = 'u8[131072]{0}', space=vmem, size = 0x20000, scoped, tag = 'output window, operand 0']
    #allocation4 [shape = 's32[2]{0}', space=sflag, size = 0x8, scoped, tag = 'scoped memory for tpu_custom_call.1']
    %13 = vsyncpa [#allocation4], 0
    %s14 = scalar_lea.sflag [#allocation4], 1
    %15 = vsyncpa %s14, 0
    loop: start=0, step=1, limit=4
    $region2: #{tpu_custom_call.1} parent=1 // loop_pre_header
      _
    $region3: #{tpu_custom_call.1} parent=1 // loop_header
      %s17 = sphi 0, %s21
      %p18 = scmp.ge.s32.totalorder %s17, 4
      %s27 = sphi 0, %s29
      %s30 = sphi 0, %s27
      %s31 = sphi 0, %s30
      %s47 = sphi 0, %s31
      %s51 = sphi 0, %s51
      %s53 = sphi 0, %s51
      %s54 = sphi 0, %s53
      %s68 = sphi 0, %s54
      %s72 = sphi 0, %s72
      %s74 = sphi 0, %s72
      %s75 = sphi 0, %s74
      %s89 = sphi 0, %s75
      %s93 = sphi 0, %s93
      %s95 = sphi 0, %s93
      %s96 = sphi 0, %s95
      %s110 = sphi 0, %s96
      %s114 = sphi 0, %s114
      %s116 = sphi 0, %s114
      %s117 = sphi 0, %s116
      %s131 = sphi 0, %s117
      %s135 = sphi 0, %s135
      %s137 = sphi 0, %s135
      %s138 = sphi 0, %s137
      %s152 = sphi 0, %s138
      %s156 = sphi 0, %s156
      %s158 = sphi 0, %s156
      %s159 = sphi 0, %s158
      %s173 = sphi 0, %s159
      %s179 = sphi 0, %s181
      %s182 = sphi 0, %s179
      %s183 = sphi 0, %s182
      %s199 = sphi 0, %s183
    $region4: #{tpu_custom_call.1} parent=1 // loop_header_branch
      %20 = sbr.rel (%p18) target = $region8
    $region5: #{tpu_custom_call.1} parent=1 // loop_body
      %s22 = ssub.s32 %s17, 1
      %s23 = ssub.s32 %s17, 2
      %s24 = sadd.s32 %s17, 1
      %s25 = ssub.s32 %s17, %s24
      %p26 = scmp.eq.s32.totalorder %s25, 0
      %s28 = sadd.s32 %s27, 1
      %s29 = scalar_select %p26, %s27, %s28
      %p32 = pneg %p26
      %p33 = scmp.eq.s32.totalorder %s17, 1
      %p34 = por %p32, %p33
      %p35 = scmp.ne.s32.totalorder %s27, %s30
      %p36 = scmp.eq.s32.totalorder %s17, 0
      %p37 = por %p35, %p36
      %p38 = scmp.ne.s32.totalorder %s27, %s30
      %p39 = scmp.eq.s32.totalorder %s22, 1
      %p40 = por %p38, %p39
      %p41 = scmp.ne.s32.totalorder %s30, %s31
      %p42 = scmp.eq.s32.totalorder %s22, 0
      %p43 = por %p41, %p42
      %p44 = scmp.ne.s32.totalorder %s30, %s31
      %p45 = scmp.eq.s32.totalorder %s23, 1
      %p46 = por %p44, %p45
      %p48 = scmp.ne.s32.totalorder %s31, %s47
      %p49 = scmp.eq.s32.totalorder %s23, 0
      %p50 = por %p48, %p49
      %s52 = sadd.s32 %s51, 1
      %p55 = scmp.eq.s32.totalorder %s17, 1
      %p56 = scmp.ne.s32.totalorder %s51, %s53
      %p57 = scmp.eq.s32.totalorder %s17, 0
      %p58 = por %p56, %p57
      %p59 = scmp.ne.s32.totalorder %s51, %s53
      %p60 = scmp.eq.s32.totalorder %s22, 1
      %p61 = por %p59, %p60
      %p62 = scmp.ne.s32.totalorder %s53, %s54
      %p63 = scmp.eq.s32.totalorder %s22, 0
      %p64 = por %p62, %p63
      %p65 = scmp.ne.s32.totalorder %s53, %s54
      %p66 = scmp.eq.s32.totalorder %s23, 1
      %p67 = por %p65, %p66
      %p69 = scmp.ne.s32.totalorder %s54, %s68
      %p70 = scmp.eq.s32.totalorder %s23, 0
      %p71 = por %p69, %p70
      %s73 = sadd.s32 %s72, 1
      %p76 = scmp.eq.s32.totalorder %s17, 1
      %p77 = scmp.ne.s32.totalorder %s72, %s74
      %p78 = scmp.eq.s32.totalorder %s17, 0
      %p79 = por %p77, %p78
      %p80 = scmp.ne.s32.totalorder %s72, %s74
      %p81 = scmp.eq.s32.totalorder %s22, 1
      %p82 = por %p80, %p81
      %p83 = scmp.ne.s32.totalorder %s74, %s75
      %p84 = scmp.eq.s32.totalorder %s22, 0
      %p85 = por %p83, %p84
      %p86 = scmp.ne.s32.totalorder %s74, %s75
      %p87 = scmp.eq.s32.totalorder %s23, 1
      %p88 = por %p86, %p87
      %p90 = scmp.ne.s32.totalorder %s75, %s89
      %p91 = scmp.eq.s32.totalorder %s23, 0
      %p92 = por %p90, %p91
      %s94 = sadd.s32 %s93, 1
      %p97 = scmp.eq.s32.totalorder %s17, 1
      %p98 = scmp.ne.s32.totalorder %s93, %s95
      %p99 = scmp.eq.s32.totalorder %s17, 0
      %p100 = por %p98, %p99
      %p101 = scmp.ne.s32.totalorder %s93, %s95
      %p102 = scmp.eq.s32.totalorder %s22, 1
      %p103 = por %p101, %p102
      %p104 = scmp.ne.s32.totalorder %s95, %s96
      %p105 = scmp.eq.s32.totalorder %s22, 0
      %p106 = por %p104, %p105
      %p107 = scmp.ne.s32.totalorder %s95, %s96
      %p108 = scmp.eq.s32.totalorder %s23, 1
      %p109 = por %p107, %p108
      %p111 = scmp.ne.s32.totalorder %s96, %s110
      %p112 = scmp.eq.s32.totalorder %s23, 0
      %p113 = por %p111, %p112
      %s115 = sadd.s32 %s114, 1
      %p118 = scmp.eq.s32.totalorder %s17, 1
      %p119 = scmp.ne.s32.totalorder %s114, %s116
      %p120 = scmp.eq.s32.totalorder %s17, 0
      %p121 = por %p119, %p120
      %p122 = scmp.ne.s32.totalorder %s114, %s116
      %p123 = scmp.eq.s32.totalorder %s22, 1
      %p124 = por %p122, %p123
      %p125 = scmp.ne.s32.totalorder %s116, %s117
      %p126 = scmp.eq.s32.totalorder %s22, 0
      %p127 = por %p125, %p126
      %p128 = scmp.ne.s32.totalorder %s116, %s117
      %p129 = scmp.eq.s32.totalorder %s23, 1
      %p130 = por %p128, %p129
      %p132 = scmp.ne.s32.totalorder %s117, %s131
      %p133 = scmp.eq.s32.totalorder %s23, 0
      %p134 = por %p132, %p133
      %s136 = sadd.s32 %s135, 1
      %p139 = scmp.eq.s32.totalorder %s17, 1
      %p140 = scmp.ne.s32.totalorder %s135, %s137
      %p141 = scmp.eq.s32.totalorder %s17, 0
      %p142 = por %p140, %p141
      %p143 = scmp.ne.s32.totalorder %s135, %s137
      %p144 = scmp.eq.s32.totalorder %s22, 1
      %p145 = por %p143, %p144
      %p146 = scmp.ne.s32.totalorder %s137, %s138
      %p147 = scmp.eq.s32.totalorder %s22, 0
      %p148 = por %p146, %p147
      %p149 = scmp.ne.s32.totalorder %s137, %s138
      %p150 = scmp.eq.s32.totalorder %s23, 1
      %p151 = por %p149, %p150
      %p153 = scmp.ne.s32.totalorder %s138, %s152
      %p154 = scmp.eq.s32.totalorder %s23, 0
      %p155 = por %p153, %p154
      %s157 = sadd.s32 %s156, 1
      %p160 = scmp.eq.s32.totalorder %s17, 1
      %p161 = scmp.ne.s32.totalorder %s156, %s158
      %p162 = scmp.eq.s32.totalorder %s17, 0
      %p163 = por %p161, %p162
      %p164 = scmp.ne.s32.totalorder %s156, %s158
      %p165 = scmp.eq.s32.totalorder %s22, 1
      %p166 = por %p164, %p165
      %p167 = scmp.ne.s32.totalorder %s158, %s159
      %p168 = scmp.eq.s32.totalorder %s22, 0
      %p169 = por %p167, %p168
      %p170 = scmp.ne.s32.totalorder %s158, %s159
      %p171 = scmp.eq.s32.totalorder %s23, 1
      %p172 = por %p170, %p171
      %p174 = scmp.ne.s32.totalorder %s159, %s173
      %p175 = scmp.eq.s32.totalorder %s23, 0
      %p176 = por %p174, %p175
      %s177 = ssub.s32 %s17, %s24
      %p178 = scmp.eq.s32.totalorder %s177, 0
      %s180 = sadd.s32 %s179, 1
      %s181 = scalar_select %p178, %s179, %s180
      %p184 = pneg %p178
      %p185 = scmp.eq.s32.totalorder %s17, 1
      %p186 = por %p184, %p185
      %p187 = scmp.ne.s32.totalorder %s179, %s182
      %p188 = scmp.eq.s32.totalorder %s17, 0
      %p189 = por %p187, %p188
      %p190 = scmp.ne.s32.totalorder %s179, %s182
      %p191 = scmp.eq.s32.totalorder %s22, 1
      %p192 = por %p190, %p191
      %p193 = scmp.ne.s32.totalorder %s182, %s183
      %p194 = scmp.eq.s32.totalorder %s22, 0
      %p195 = por %p193, %p194
      %p196 = scmp.ne.s32.totalorder %s182, %s183
      %p197 = scmp.eq.s32.totalorder %s23, 1
      %p198 = por %p196, %p197
      %p200 = scmp.ne.s32.totalorder %s183, %s199
      %p201 = scmp.eq.s32.totalorder %s23, 0
      %p202 = por %p200, %p201
      %p203 = scmp.le.s32.totalorder 1, %s17
      %p204 = scmp.lt.s32.totalorder %s17, 3
      %p205 = pnand %p203, %p204
      %p206 = pneg %p205
      // Predicated region
      $region9: #{tpu_custom_call.1} parent=5 // pred_check
        _
      $region10: #{tpu_custom_call.1} parent=5 // pred_check_branch
        %208 = sbr.rel (%p205) target = $region12
      $region11: #{tpu_custom_call.1} parent=5 // pred_region
        %s209 = ssub.s32 %s17, 1
        // Predicated region
        $region13: #{tpu_custom_call.1} parent=11 // pred_check
          %p210 = pneg %p64
        $region14: #{tpu_custom_call.1} parent=11 // pred_check_branch
          %212 = sbr.rel (%p210) target = $region16
        $region15: #{tpu_custom_call.1} parent=11 // pred_region
          _
        $region16: #{tpu_custom_call.1} parent=11 // pred_fallthru
          _
        // Predicated region
        $region17: #{tpu_custom_call.1} parent=11 // pred_check
          %p213 = pneg %p85
        $region18: #{tpu_custom_call.1} parent=11 // pred_check_branch
          %215 = sbr.rel (%p213) target = $region20
        $region19: #{tpu_custom_call.1} parent=11 // pred_region
          _
        $region20: #{tpu_custom_call.1} parent=11 // pred_fallthru
          _
        // Predicated region
        $region21: #{tpu_custom_call.1} parent=11 // pred_check
          %p216 = pneg %p106
        $region22: #{tpu_custom_call.1} parent=11 // pred_check_branch
          %218 = sbr.rel (%p216) target = $region24
        $region23: #{tpu_custom_call.1} parent=11 // pred_region
          _
        $region24: #{tpu_custom_call.1} parent=11 // pred_fallthru
          _
        // Predicated region
        $region25: #{tpu_custom_call.1} parent=11 // pred_check
          %p219 = pneg %p127
        $region26: #{tpu_custom_call.1} parent=11 // pred_check_branch
          %221 = sbr.rel (%p219) target = $region28
        $region27: #{tpu_custom_call.1} parent=11 // pred_region
          _
        $region28: #{tpu_custom_call.1} parent=11 // pred_fallthru
          _
        // Predicated region
        $region29: #{tpu_custom_call.1} parent=11 // pred_check
          %p222 = pneg %p148
        $region30: #{tpu_custom_call.1} parent=11 // pred_check_branch
          %224 = sbr.rel (%p222) target = $region32
        $region31: #{tpu_custom_call.1} parent=11 // pred_region
          _
        $region32: #{tpu_custom_call.1} parent=11 // pred_fallthru
          _
        // Predicated region
        $region33: #{tpu_custom_call.1} parent=11 // pred_check
          %p225 = pneg %p169
        $region34: #{tpu_custom_call.1} parent=11 // pred_check_branch
          %227 = sbr.rel (%p225) target = $region36
        $region35: #{tpu_custom_call.1} parent=11 // pred_region
          _
        $region36: #{tpu_custom_call.1} parent=11 // pred_fallthru
          _
      $region12: #{tpu_custom_call.1} parent=5 // pred_fallthru
        _
      %p228 = scmp.lt.s32.totalorder %s17, 2
      // Predicated region
      $region37: #{tpu_custom_call.1} parent=5 // pred_check
        %p229 = pneg %p228
      $region38: #{tpu_custom_call.1} parent=5 // pred_check_branch
        %231 = sbr.rel (%p229) target = $region40
      $region39: #{tpu_custom_call.1} parent=5 // pred_region
        // Predicated region
        $region41: #{tpu_custom_call.1} parent=39 // pred_check
          %p232 = pneg %p37
        $region42: #{tpu_custom_call.1} parent=39 // pred_check_branch
          %234 = sbr.rel (%p232) target = $region44
        $region43: #{tpu_custom_call.1} parent=39 // pred_region
          %p235 = scmp.lt.s32.totalorder %s17, 1
          %s236 = scalar_select %p235, %s17, 1
          %s237 = smul.addr %s236, 8
          %s238 = smul.addr %s237, 8
          %s239 = scalar_lea.vmem %s0, %s238
        $region44: #{tpu_custom_call.1} parent=39 // pred_fallthru
          _
      $region40: #{tpu_custom_call.1} parent=5 // pred_fallthru
        _
      %p240 = scmp.le.s32.totalorder 1, %s17
      %p241 = scmp.lt.s32.totalorder %s17, 3
      %p242 = pnand %p240, %p241
      %p243 = pneg %p242
      // Predicated region
      $region45: #{tpu_custom_call.1} parent=5 // pred_check
        _
      $region46: #{tpu_custom_call.1} parent=5 // pred_check_branch
        %245 = sbr.rel (%p242) target = $region48
      $region47: #{tpu_custom_call.1} parent=5 // pred_region
        %s246 = ssub.s32 %s17, 1
        %p247 = scmp.lt.s32.totalorder %s22, 1
        %s248 = scalar_select %p247, %s22, 1
        %s249 = smul.addr %s248, 8
        %s250 = smul.addr %s249, 8
        %s251 = scalar_lea.vmem %s0, %s250
        %p252 = pneg %p43
        %p253 = pneg %p40
        %p254 = pneg %p64
        %p255 = pneg %p61
        %p256 = pneg %p85
        %p257 = pneg %p82
        %p258 = pneg %p106
        %p259 = pneg %p103
        %p260 = pneg %p127
        %p261 = pneg %p124
        %p262 = pneg %p148
        %p263 = pneg %p145
        %p264 = pneg %p169
        %p265 = pneg %p166
        %p266 = pneg %p195
        %p267 = pneg %p192
        %s268 = sand.u32 %s182, 1
        %s269 = scalar_lea.sflag [#allocation4], %s268
        %s270 = sand.u32 %s182, 1
        %s271 = smul.addr %s270, 128
        %s272 = scalar_lea.vmem [#allocation3], %s271
        %p273 = scmp.lt.s32.totalorder %s22, 1
        %s274 = scalar_select %p273, %s22, 1
        %s275 = smul.addr %s274, 8
        %s276 = smul.addr %s275, 8
        %s277 = scalar_lea.vmem %s0, %s276
        %v278 = vld [vmem:[%s277] sm:$0xff]
        %v279 = vld [vmem:[%s277 + $0x8] sm:$0xff]
        %v280 = vld [vmem:[%s277 + $0x10] sm:$0xff]
        %v281 = vld [vmem:[%s277 + $0x18] sm:$0xff]
        %v282 = vld [vmem:[%s277 + $0x20] sm:$0xff]
        %v283 = vld [vmem:[%s277 + $0x28] sm:$0xff]
        %v284 = vld [vmem:[%s277 + $0x30] sm:$0xff]
        %v285 = vld [vmem:[%s277 + $0x38] sm:$0xff]
        %v286 = vadd.f32 %v278, %v279
        %287 = vadd.xlane.f32.xlu0 %v286
        %v288 = vpop.xlane.xlu0 %287
        %v289 = vadd.f32 %v280, %v281
        %290 = vadd.xlane.f32.xlu0 %v289
        %v291 = vpop.xlane.xlu0 %290
        %v292 = vadd.f32 %v282, %v283
        %293 = vadd.xlane.f32.xlu0 %v292
        %v294 = vpop.xlane.xlu0 %293
        %v295 = vadd.f32 %v284, %v285
        %296 = vadd.xlane.f32.xlu0 %v295
        %v297 = vpop.xlane.xlu0 %296
        %v298 = vmul.f32 %v288, 0.00390625
        %v299 = vmul.f32 %v291, 0.00390625
        %v300 = vmul.f32 %v294, 0.00390625
        %v301 = vmul.f32 %v297, 0.00390625
        %v302 = vld [vmem:[%s1] sm:$0xff]
        %v303 = vld [vmem:[%s1 + $0x8] sm:$0xff]
        %v304 = vld [vmem:[%s1 + $0x10] sm:$0xff]
        %v305 = vld [vmem:[%s1 + $0x18] sm:$0xff]
        %v306 = vmul.f32 %v298, %v302
        %v307 = vmul.f32 %v299, %v303
        %v308 = vmul.f32 %v300, %v304
        %v309 = vmul.f32 %v301, %v305
        %vm310 = vcmask 15360
        %v311 = vsel %vm310, %v306, 0.0
        %v312 = vsel %vm310, %v307, 0.0
        %v313 = vadd.f32 %v311, %v312
        %v314 = vsel %vm310, %v308, 0.0
        %v315 = vadd.f32 %v313, %v314
        %v316 = vsel %vm310, %v309, 0.0
        %v317 = vadd.f32 %v315, %v316
        %v318 = vrot.slane %v317, 4
        %v319 = vadd.f32 %v317, %v318
        %v320 = vrot.slane %v319, 2
        %v321 = vadd.f32 %v319, %v320
        %v322 = vrot.slane %v321, 1
        %v323 = vadd.f32 %v321, %v322
        %v324 = vld [vmem:[%s2] sm:$0x1]
        %v325 = vadd.f32 %v323, %v324
        %v326 = vmax.f32 %v325, 0.0
        %v327 = vld [vmem:[%s3] sm:$0xff]
        %v328 = vld [vmem:[%s3 + $0x8] sm:$0xff]
        %v329 = vld [vmem:[%s3 + $0x10] sm:$0xff]
        %v330 = vld [vmem:[%s3 + $0x18] sm:$0xff]
        %v331 = vlaneseq
        %v332 = vshrl.u32 %v331, 7
        %v333 = vsub.s32 0, %v332
        %v334 = vrot.slane %v326, %v333
        %v335 = vmul.f32 %v334, %v327
        %v336 = vmul.f32 %v334, %v328
        %v337 = vmul.f32 %v334, %v329
        %v338 = vmul.f32 %v334, %v330
        %v339 = vsel %vm310, %v335, 0.0
        %340 = vadd.xlane.f32.xlu0 %v339
        %v341 = vpop.xlane.xlu0 %340
        %v342 = vsel %vm310, %v336, 0.0
        %343 = vadd.xlane.f32.xlu0 %v342
        %v344 = vpop.xlane.xlu0 %343
        %v345 = vsel %vm310, %v337, 0.0
        %346 = vadd.xlane.f32.xlu0 %v345
        %v347 = vpop.xlane.xlu0 %346
        %v348 = vsel %vm310, %v338, 0.0
        %349 = vadd.xlane.f32.xlu0 %v348
        %v350 = vpop.xlane.xlu0 %349
        %v351 = vld [vmem:[%s4] sm:$0xff]
        %v352 = vld [vmem:[%s4 + $0x8] sm:$0xff]
        %v353 = vld [vmem:[%s4 + $0x10] sm:$0xff]
        %v354 = vld [vmem:[%s4 + $0x18] sm:$0xff]
        %v355 = vadd.f32 %v341, %v351
        %v356 = vadd.f32 %v344, %v352
        %v357 = vadd.f32 %v347, %v353
        %v358 = vadd.f32 %v350, %v354
        %v359 = vxor.u32 %v355, 2147483648
        %v360 = vxor.u32 %v356, 2147483648
        %v361 = vxor.u32 %v357, 2147483648
        %v362 = vxor.u32 %v358, 2147483648
        %v363 = vmul.f32 %v359, 1.442695
        %v364 = vpow.pop %v363
        %v365 = vmul.f32 %v360, 1.442695
        %v366 = vpow.pop %v365
        %v367 = vmul.f32 %v361, 1.442695
        %v368 = vpow.pop %v367
        %v369 = vmul.f32 %v362, 1.442695
        %v370 = vpow.pop %v369
        %v371 = vadd.f32 %v364, 1.0
        %v372 = vadd.f32 %v366, 1.0
        %v373 = vadd.f32 %v368, 1.0
        %v374 = vadd.f32 %v370, 1.0
        %v375 = vrcp.pop %v371
        %v376 = vmul.f32 1.0, %v375
        %v377 = vrcp.pop %v372
        %v378 = vmul.f32 1.0, %v377
        %v379 = vrcp.pop %v373
        %v380 = vmul.f32 1.0, %v379
        %v381 = vrcp.pop %v374
        %v382 = vmul.f32 1.0, %v381
        %384 = vset.pattern.permute.xlu0 0
        %385 = vperm.xlu0 %384, %v376
        %v386 = vpop.permute.xlu0 %385
        %389 = vset.pattern.permute.xlu0 0
        %390 = vperm.xlu0 %389, %v378
        %v391 = vpop.permute.xlu0 %390
        %394 = vset.pattern.permute.xlu0 0
        %395 = vperm.xlu0 %394, %v380
        %v396 = vpop.permute.xlu0 %395
        %399 = vset.pattern.permute.xlu0 0
        %400 = vperm.xlu0 %399, %v382
        %v401 = vpop.permute.xlu0 %400
        %v403 = vmul.f32 %v278, %v386
        %v404 = vmul.f32 %v279, %v386
        %v405 = vmul.f32 %v280, %v391
        %v406 = vmul.f32 %v281, %v391
        %v407 = vmul.f32 %v282, %v396
        %v408 = vmul.f32 %v283, %v396
        %v409 = vmul.f32 %v284, %v401
        %v410 = vmul.f32 %v285, %v401
        %411 = vst [vmem:[%s272] sm:$0xff] %v403
        %412 = vst [vmem:[%s272 + $0x8] sm:$0xff] %v404
        %413 = vst [vmem:[%s272 + $0x10] sm:$0xff] %v405
        %414 = vst [vmem:[%s272 + $0x18] sm:$0xff] %v406
        %415 = vst [vmem:[%s272 + $0x20] sm:$0xff] %v407
        %416 = vst [vmem:[%s272 + $0x28] sm:$0xff] %v408
        %417 = vst [vmem:[%s272 + $0x30] sm:$0xff] %v409
        %418 = vst [vmem:[%s272 + $0x38] sm:$0xff] %v410
        %v419 = vld [vmem:[%s5] sm:$0xff]
        %v420 = vld [vmem:[%s5 + $0x8] sm:$0xff]
        %v421 = vld [vmem:[%s5 + $0x10] sm:$0xff]
        %v422 = vld [vmem:[%s5 + $0x18] sm:$0xff]
        %424 = vset.pattern.permute.xlu0 0
        %425 = vperm.xlu0 %424, %v419
        %v426 = vpop.permute.xlu0 %425
        %429 = vset.pattern.permute.xlu0 0
        %430 = vperm.xlu0 %429, %v420
        %v431 = vpop.permute.xlu0 %430
        %434 = vset.pattern.permute.xlu0 0
        %435 = vperm.xlu0 %434, %v421
        %v436 = vpop.permute.xlu0 %435
        %439 = vset.pattern.permute.xlu0 0
        %440 = vperm.xlu0 %439, %v422
        %v441 = vpop.permute.xlu0 %440
        %v443 = vmul.f32 %v278, %v426
        %v444 = vmul.f32 %v279, %v426
        %v445 = vmul.f32 %v280, %v431
        %v446 = vmul.f32 %v281, %v431
        %v447 = vmul.f32 %v282, %v436
        %v448 = vmul.f32 %v283, %v436
        %v449 = vmul.f32 %v284, %v441
        %v450 = vmul.f32 %v285, %v441
        %v451 = vadd.f32 %v443, %v445
        %v452 = vadd.f32 %v451, %v447
        %v453 = vadd.f32 %v452, %v449
        %v454 = vrot.slane %v453, 4
        %v455 = vadd.f32 %v453, %v454
        %v456 = vrot.slane %v455, 2
        %v457 = vadd.f32 %v455, %v456
        %v458 = vrot.slane %v457, 1
        %v459 = vadd.f32 %v457, %v458
        %v460 = vadd.f32 %v444, %v446
        %v461 = vadd.f32 %v460, %v448
        %v462 = vadd.f32 %v461, %v450
        %v463 = vrot.slane %v462, 4
        %v464 = vadd.f32 %v462, %v463
        %v465 = vrot.slane %v464, 2
        %v466 = vadd.f32 %v464, %v465
        %v467 = vrot.slane %v466, 1
        %v468 = vadd.f32 %v466, %v467
        %s469 = sld [smem:[#allocation2]]
        %v470 = vstv %s469
        %v471 = vadd.f32 %v459, %v470
        %v472 = vadd.f32 %v468, %v470
        %v473 = vxor.u32 %v471, 2147483648
        %v474 = vxor.u32 %v472, 2147483648
        %v475 = vmul.f32 %v473, 1.442695
        %v476 = vpow.pop %v475
        %v477 = vmul.f32 %v474, 1.442695
        %v478 = vpow.pop %v477
        %v479 = vadd.f32 %v476, 1.0
        %v480 = vadd.f32 %v478, 1.0
        %v481 = vrcp.pop %v479
        %v482 = vmul.f32 1.0, %v481
        %v483 = vrcp.pop %v480
        %v484 = vmul.f32 1.0, %v483
        %v485 = vmul.f32 %v278, %v482
        %v486 = vmul.f32 %v279, %v484
        %v487 = vmul.f32 %v280, %v482
        %v488 = vmul.f32 %v281, %v484
        %v489 = vmul.f32 %v282, %v482
        %v490 = vmul.f32 %v283, %v484
        %v491 = vmul.f32 %v284, %v482
        %v492 = vmul.f32 %v285, %v484
        %493 = vst [vmem:[%s272 + $0x40] sm:$0xff] %v485
        %494 = vst [vmem:[%s272 + $0x48] sm:$0xff] %v486
        %495 = vst [vmem:[%s272 + $0x50] sm:$0xff] %v487
        %496 = vst [vmem:[%s272 + $0x58] sm:$0xff] %v488
        %497 = vst [vmem:[%s272 + $0x60] sm:$0xff] %v489
        %498 = vst [vmem:[%s272 + $0x68] sm:$0xff] %v490
        %499 = vst [vmem:[%s272 + $0x70] sm:$0xff] %v491
        %500 = vst [vmem:[%s272 + $0x78] sm:$0xff] %v492
        %s501 = sand.u32 %s182, 1
        %s502 = scalar_lea.sflag [#allocation4], %s501
        %s503 = sand.u32 %s182, 1
        %s504 = smul.addr %s503, 128
        %s505 = scalar_lea.vmem [#allocation3], %s504
        // Predicated region
        $region49: #{tpu_custom_call.1} parent=47 // pred_check
          %p506 = pneg %p192
        $region50: #{tpu_custom_call.1} parent=47 // pred_check_branch
          %508 = sbr.rel (%p506) target = $region52
        $region51: #{tpu_custom_call.1} parent=47 // pred_region
          %s510 = ssub.s32 2048, 2048
          %511 = vsyncadd %s502, %s510
          %s512 = smul.addr %s22, 16
          %s513 = smul.addr %s512, 128
          %s514 = scalar_lea.hbm %s7, %s513
          %s515 = sshll.u32 %s505, 4
          %s516 = int_to_ptr.vmem [resolvable:$true] %s515
          %521 = dma.vmem_to_hbm [thread:$0]  %s516, 2048, %s514, %s502, 256, 256, 16
        $region52: #{tpu_custom_call.1} parent=47 // pred_fallthru
          _
      $region48: #{tpu_custom_call.1} parent=5 // pred_fallthru
        _
      %p522 = scmp.le.s32.totalorder 2, %s17
      // Predicated region
      $region53: #{tpu_custom_call.1} parent=5 // pred_check
        %p523 = pneg %p522
      $region54: #{tpu_custom_call.1} parent=5 // pred_check_branch
        %525 = sbr.rel (%p523) target = $region56
      $region55: #{tpu_custom_call.1} parent=5 // pred_region
        %s526 = ssub.s32 %s17, 2
        // Predicated region
        $region57: #{tpu_custom_call.1} parent=55 // pred_check
          %p527 = pneg %p198
        $region58: #{tpu_custom_call.1} parent=55 // pred_check_branch
          %529 = sbr.rel (%p527) target = $region60
        $region59: #{tpu_custom_call.1} parent=55 // pred_region
          %s530 = sand.u32 %s183, 1
          %s531 = scalar_lea.sflag [#allocation4], %s530
          %s532 = sand.u32 %s183, 1
          %s533 = smul.addr %s532, 128
          %s534 = scalar_lea.vmem [#allocation3], %s533
          %535 = dma.done %s531, 2048
        $region60: #{tpu_custom_call.1} parent=55 // pred_fallthru
          _
      $region56: #{tpu_custom_call.1} parent=5 // pred_fallthru
        _
    $region6: #{tpu_custom_call.1} parent=1 // loop_footer
      %s21 = sadd.s32 1, %s17
    $region7: #{tpu_custom_call.1} parent=1 // loop_footer_branch
      %16 = sbr.rel target = $region3
    $region8: #{tpu_custom_call.1} parent=1 // loop_exit
      _
    %536 = vsyncpa [#allocation4], 1
    %s537 = scalar_lea.sflag [#allocation4], 1
    %538 = vsyncpa %s537, 1

</llo_original>
